<compile_context>
chip_gen: v7x
topology: tpu7x:2x2x1
jax: 0.10.0
libtpu: 0.0.40
codegen_flags: <defaults>
</compile_context>

<pallas_src>
import math
from functools import partial

import jax
import jax.numpy as jnp
from jax.experimental import pallas as pl
from jax.experimental.pallas import tpu as pltpu


# ----------------------------------------------------------------------------
# Kernel
# ----------------------------------------------------------------------------

def _pe_add_kernel(x_ref, pe_ref, o_ref, *, bcast):
    # x_ref : (ts, B*D)   activation slab (lane-dense)
    # pe_ref: (ts, D)     positional-encoding rows for this sequence tile
    # o_ref : (ts, B*D)
    pe = pe_ref[...]                                   # (ts, D)
    if bcast > 1:
        pe = jnp.tile(pe, (1, bcast))                  # (ts, B*D): pe row repeated per batch
    o_ref[...] = (x_ref[...] + pe).astype(o_ref.dtype)


# ----------------------------------------------------------------------------
# Wrapper
# ----------------------------------------------------------------------------

def make_positional_encoding(d_model, max_len=5000):
    """Builds the same buffer as PositionalEncoding.__init__ (max_len, 1, d_model)."""
    position = jnp.arange(max_len, dtype=jnp.float32)[:, None]
    div_term = jnp.exp(jnp.arange(0, d_model, 2, dtype=jnp.float32)
                       * (-math.log(10000.0) / d_model))
    pe = jnp.zeros((max_len, d_model), jnp.float32)
    pe = pe.at[:, 0::2].set(jnp.sin(position * div_term))
    pe = pe.at[:, 1::2].set(jnp.cos(position * div_term))
    return pe[:, None, :]                              # (max_len, 1, d_model)


def positional_encoding_forward(x, pe):
    """x: (S, B, D) seq-first (PyTorch convention); pe: (max_len, 1, D)."""
    S, B, D = x.shape
    x2 = x.reshape(S, B * D)                           # free reshape (trailing axes merge)
    pe2 = pe[:S, 0, :]                                 # (S, D) -- static slice under jit

    # Sequence tile: ~2 MiB activation block, rounded DOWN to a multiple of 8
    # sublanes (min 8), clamped to the full sequence.  Double-buffered
    # (x + out + pe) blocks then stay far below the default scoped-VMEM limit
    # on every chip generation.
    row_bytes = B * D * x.dtype.itemsize
    budget = 2 * 1024 * 1024
    ts = budget // max(row_bytes, 1)
    ts = max(8, (ts // 8) * 8)
    ts = min(ts, S)

    out = pl.pallas_call(
        partial(_pe_add_kernel, bcast=B),
        out_shape=jax.ShapeDtypeStruct((S, B * D), x.dtype),
        grid=(pl.cdiv(S, ts),),
        in_specs=[
            pl.BlockSpec((ts, B * D), lambda i: (i, 0)),
            pl.BlockSpec((ts, D), lambda i: (i, 0)),
        ],
        out_specs=pl.BlockSpec((ts, B * D), lambda i: (i, 0)),
        compiler_params=pltpu.CompilerParams(
            dimension_semantics=("parallel",)),
    )(x2, pe2)
    return out.reshape(S, B, D)


# ----------------------------------------------------------------------------
# main
# ----------------------------------------------------------------------------

if __name__ == "__main__":
    # Small shapes consistent with the module's seq-first convention.
    seq_len = 16
    batch = 2
    d_model = 64
    max_len = 5000

    key = jax.random.PRNGKey(0)
    x = jax.random.normal(key, (seq_len, batch, d_model), jnp.float32)

    pe = make_positional_encoding(d_model, max_len=max_len)

    fwd = jax.jit(positional_encoding_forward)
    out = jax.block_until_ready(fwd(x, pe))

    # Reference check against the plain-JAX equivalent of the PyTorch forward.
    ref = x + pe[:seq_len]
    assert out.shape == (seq_len, batch, d_model), out.shape
    assert bool(jnp.all(jnp.isfinite(out)))
    assert bool(jnp.allclose(out, ref, atol=1e-6, rtol=1e-6))

    print("KERNEL_OK")
</pallas_src>

<mosaic_0001>
module attributes {stable_mosaic.version = 11 : i64} {
  func.func @_pe_add_kernel(%arg0: i32, %arg1: memref<16x128xf32, #tpu.memory_space<vmem>>, %arg2: memref<16x64xf32, #tpu.memory_space<vmem>>, %arg3: memref<16x128xf32, #tpu.memory_space<vmem>>) attributes {dimension_semantics = [#tpu.dimension_semantics<parallel>], iteration_bounds = array<i64: 1>, scalar_prefetch = 0 : i64, scratch_operands = 0 : i64, tpu.core_type = #tpu.core_type<tc>, window_params = [{transform_indices = @transform_0, window_bounds = array<i64: 16, 128>}, {transform_indices = @transform_1, window_bounds = array<i64: 16, 64>}, {transform_indices = @transform_2, window_bounds = array<i64: 16, 128>}]} {
    %c0 = arith.constant 0 : index
    %c0_0 = arith.constant 0 : index
    %0 = vector.load %arg2[%c0, %c0_0] : memref<16x64xf32, #tpu.memory_space<vmem>>, vector<16x64xf32>
    %1 = tpu.concatenate %0, %0 in 1 : vector<16x64xf32>, vector<16x64xf32> -> vector<16x128xf32>
    %c0_1 = arith.constant 0 : index
    %c0_2 = arith.constant 0 : index
    %2 = vector.load %arg1[%c0_1, %c0_2] : memref<16x128xf32, #tpu.memory_space<vmem>>, vector<16x128xf32>
    %3 = arith.addf %2, %1 : vector<16x128xf32>
    %c0_3 = arith.constant 0 : index
    %c0_4 = arith.constant 0 : index
    %4 = vector.load %arg3[%c0_3, %c0_4] : memref<16x128xf32, #tpu.memory_space<vmem>>, vector<16x128xf32>
    tpu.vector_store %arg3[%c0_3, %c0_4], %3 {strides = array<i32>} : memref<16x128xf32, #tpu.memory_space<vmem>>, vector<16x128xf32>,
    return
  }
  func.func @transform_0(%arg0: i32) -> (i32, i32) {
    %c0_i32 = arith.constant 0 : i32
    %c0_i32_0 = arith.constant 0 : i32
    return %arg0, %c0_i32 : i32, i32
  }
  func.func @transform_1(%arg0: i32) -> (i32, i32) {
    %c0_i32 = arith.constant 0 : i32
    %c0_i32_0 = arith.constant 0 : i32
    return %arg0, %c0_i32 : i32, i32
  }
  func.func @transform_2(%arg0: i32) -> (i32, i32) {
    %c0_i32 = arith.constant 0 : i32
    %c0_i32_0 = arith.constant 0 : i32
    return %arg0, %c0_i32 : i32, i32
  }
}

</mosaic_0001>

<llo_original>
// kernel: positional_encoding_forward.1
$region0: #{positional_encoding_forward.1}
  #allocation0 [shape = 'u32[]', space=smem, size = 0x4, offset = 0x4, fixed_abs, tag = 'smem constant byte address 0x4 - core index']
  #allocation1 [shape = 'u32[144,128]{1,0:T(1,128)}', space=vmem, size = 0x12000, scoped, tag = 'internal scratch']
  %s0 = inlined_call_operand.vmem [shape: f32[16,128], index: 0, kind: input, shape index: {}]
  %s1 = inlined_call_operand.vmem [shape: f32[16,64], index: 1, kind: input, shape index: {}]
  %s2 = inlined_call_operand.vmem [shape: f32[16,128], index: 2, kind: output, shape index: {}]
  %s3 = sld [smem:[#allocation0]]
  $region18: #{positional_encoding_forward.1} parent=0
    _
  %s5 = ssub.s32 1, %s3
  %s6 = scalar_select 0, %s5, %s3
  // Predicated region
  $region2: #{positional_encoding_forward.1} parent=0 // pred_check
    _
  $region3: #{positional_encoding_forward.1} parent=0 // pred_check_branch
    %8 = sbr.rel (0) target = $region5
  $region4: #{positional_encoding_forward.1} parent=0 // pred_region
    _
  $region5: #{positional_encoding_forward.1} parent=0 // pred_fallthru
    _
  // Predicated region
  $region6: #{positional_encoding_forward.1} parent=0 // pred_check
    _
  $region7: #{positional_encoding_forward.1} parent=0 // pred_check_branch
    %10 = sbr.rel (0) target = $region9
  $region8: #{positional_encoding_forward.1} parent=0 // pred_region
    _
  $region9: #{positional_encoding_forward.1} parent=0 // pred_fallthru
    _
  %v11 = vld [vmem:[%s1] sm:$0xff]
  %v12 = vld [vmem:[%s1 + $0x8] sm:$0xff]
  %15 = vrot.lane.b32.xlu0 %v11, 64
  %v16 = vpop.permute.xlu0 %15
  %17 = vrot.lane.b32.xlu0 %v12, 64
  %v18 = vpop.permute.xlu0 %17
  %vm21 = vcmask 523264
  %v22 = vsel %vm21, %v11, %v16
  %v23 = vsel %vm21, %v12, %v18
  %v24 = vld [vmem:[%s0] sm:$0xff]
  %v25 = vld [vmem:[%s0 + $0x8] sm:$0xff]
  %v26 = vadd.f32 %v24, %v22
  %v27 = vadd.f32 %v25, %v23
  %28 = vst [vmem:[%s2] sm:$0xff] %v26
  %29 = vst [vmem:[%s2 + $0x8] sm:$0xff] %v27
  // Predicated region
  $region10: #{positional_encoding_forward.1} parent=0 // pred_check
    _
  $region11: #{positional_encoding_forward.1} parent=0 // pred_check_branch
    %31 = sbr.rel (0) target = $region13
  $region12: #{positional_encoding_forward.1} parent=0 // pred_region
    _
  $region13: #{positional_encoding_forward.1} parent=0 // pred_fallthru
    _
  // Predicated region
  $region14: #{positional_encoding_forward.1} parent=0 // pred_check
    _
  $region15: #{positional_encoding_forward.1} parent=0 // pred_check_branch
    %33 = sbr.rel (0) target = $region17
  $region16: #{positional_encoding_forward.1} parent=0 // pred_region
    _
  $region17: #{positional_encoding_forward.1} parent=0 // pred_fallthru
    _

</llo_original>
